<compile_context>
chip_gen: v7x
topology: tpu7x:2x2x1
jax: 0.10.0
libtpu: 0.0.40
codegen_flags: <defaults>
</compile_context>

<pallas_src>
import jax
import jax.numpy as jnp
from jax.experimental import pallas as pl
from jax.experimental.pallas import tpu as pltpu


def _round_up(x: int, m: int) -> int:
    return ((x + m - 1) // m) * m


def _pick_tile(dim_aligned: int, target: int, align: int, min_tile: int) -> int:
    """Tile <= target, multiple of `align`.

    Prefers an exact divisor of `dim_aligned` (no extra padding) but never
    collapses below `min_tile`; if no acceptable divisor exists, returns the
    target tile and the caller pads the dim up to a multiple of it.
    """
    if dim_aligned <= target:
        return dim_aligned
    target = max((target // align) * align, align)
    if dim_aligned <= target:
        return dim_aligned
    floor = max(min(min_tile, dim_aligned), align)
    t = target
    while t >= floor:
        if dim_aligned % t == 0:
            return t
        t -= align
    return target


def _bmm_kernel(a_ref, b_ref, o_ref, acc_ref):
    # a_ref: (bb, tm, tk), b_ref: (bb, tk, tn), o_ref: (bb, tm, tn)
    # acc_ref: (bb, tm, tn) f32/i32 accumulator, resident across the K axis.
    k = pl.program_id(3)

    prod = jnp.einsum(
        "bmk,bkn->bmn",
        a_ref[...],
        b_ref[...],
        preferred_element_type=acc_ref.dtype,
    )

    # First K step writes directly (saves a zero-fill store + reload).
    @pl.when(k == 0)
    def _():
        acc_ref[...] = prod

    @pl.when(k > 0)
    def _():
        acc_ref[...] += prod

    # Cast to the output dtype only once, on the final K step (partial sums
    # stay in full precision; store path stays off the K loop).
    @pl.when(k == pl.num_programs(3) - 1)
    def _():
        o_ref[...] = acc_ref[...].astype(o_ref.dtype)


def batch_matmul(a: jax.Array, b: jax.Array, *, tm: int = 512, tn: int = 512,
                 tk: int = 512, batch_block: int | None = None) -> jax.Array:
    """Batched matmul equivalent to torch.bmm(a, b).

    a: [B, M, K], b: [B, K, N] -> [B, M, N]
    """
    B, M, K = a.shape
    B2, K2, N = b.shape
    assert B == B2 and K == K2, "shape mismatch for bmm"

    out_dtype = jnp.result_type(a.dtype, b.dtype)
    # Integer inputs accumulate in int32 (matches torch.bmm integer semantics
    # on v5e/v6e, whose MXU has int8 support).
    # TODO(synk): on v7x the MXU is fp8-only; route integer inputs through a
    # bf16 cast (f32 accumulation) there instead of int32 dots.
    acc_dtype = (
        jnp.int32 if jnp.issubdtype(out_dtype, jnp.integer) else jnp.float32
    )

    itemsize = jnp.dtype(a.dtype).itemsize
    # Native sublane packing granule for the second-to-last dim:
    # f32 -> 8, bf16 -> 16, int8/fp8 -> 32.
    granule = max(8, 32 // max(itemsize, 1))

    # Alignment padding (lane = 128 for K/N, sublane granule for M).
    m_aligned = _round_up(M, granule)
    k_aligned = _round_up(K, 128)
    n_aligned = _round_up(N, 128)

    # Tile selection (divisor-preferring, floor-protected).
    tm = _pick_tile(m_aligned, tm, granule, min_tile=128)
    tk = _pick_tile(k_aligned, tk, 128, min_tile=256)
    tn = _pick_tile(n_aligned, tn, 128, min_tile=256)

    # Final padded dims are exact multiples of the chosen tiles.
    m_pad = _round_up(m_aligned, tm)
    k_pad = _round_up(k_aligned, tk)
    n_pad = _round_up(n_aligned, tn)

    # Batch blocking: amortize per-grid-step overhead when the per-batch
    # output tile is small, bounded by a double-buffered VMEM budget.
    if batch_block is None:
        work_cap = max(1, (256 * 256) // (tm * tn))
        per_batch_bytes = ((tm * tk + tk * tn + tm * tn) * itemsize * 2
                           + tm * tn * jnp.dtype(acc_dtype).itemsize)
        vmem_cap = max(1, (12 << 20) // per_batch_bytes)
        bb = min(B, work_cap, vmem_cap)
    else:
        bb = max(1, min(B, batch_block))
    while B % bb != 0:
        bb -= 1

    a_p = a
    b_p = b
    if (m_pad, k_pad) != (M, K):
        a_p = jnp.pad(a, ((0, 0), (0, m_pad - M), (0, k_pad - K)))
    if (k_pad, n_pad) != (K, N):
        b_p = jnp.pad(b, ((0, 0), (0, k_pad - K), (0, n_pad - N)))

    grid = (B // bb, m_pad // tm, n_pad // tn, k_pad // tk)

    grid_spec = pltpu.PrefetchScalarGridSpec(
        num_scalar_prefetch=0,
        grid=grid,
        in_specs=[
            pl.BlockSpec((bb, tm, tk), lambda bi, mi, ni, ki: (bi, mi, ki)),
            pl.BlockSpec((bb, tk, tn), lambda bi, mi, ni, ki: (bi, ki, ni)),
        ],
        out_specs=pl.BlockSpec(
            (bb, tm, tn), lambda bi, mi, ni, ki: (bi, mi, ni)
        ),
        scratch_shapes=[pltpu.VMEM((bb, tm, tn), acc_dtype)],
    )

    out_p = pl.pallas_call(
        _bmm_kernel,
        out_shape=jax.ShapeDtypeStruct((B, m_pad, n_pad), out_dtype),
        grid_spec=grid_spec,
        compiler_params=pltpu.CompilerParams(
            dimension_semantics=("parallel", "parallel", "parallel",
                                 "arbitrary"),
        ),
    )(a_p, b_p)

    if (m_pad, n_pad) != (M, N):
        out_p = out_p[:, :M, :N]
    return out_p


if __name__ == "__main__":
    key = jax.random.PRNGKey(0)
    ka, kb, kc, kd, ke, kf = jax.random.split(key, 6)

    # --- Test 1: small torch.bmm-style shape (batch blocking, single step). --
    B, M, K, N = 2, 8, 32, 16
    a = jax.random.normal(ka, (B, M, K), dtype=jnp.float32)
    b = jax.random.normal(kb, (B, K, N), dtype=jnp.float32)

    out = jax.block_until_ready(batch_matmul(a, b))
    ref = jnp.einsum("bmk,bkn->bmn", a, b)
    assert out.shape == (B, M, N)
    assert jnp.allclose(out, ref, atol=1e-4, rtol=1e-4)

    # --- Test 2: multi-K-step accumulation + batch blocking + pad/slice. -----
    B2_, M2_, K2_, N2_ = 4, 16, 1280, 200
    a2 = jax.random.normal(kc, (B2_, M2_, K2_), dtype=jnp.float32)
    b2 = jax.random.normal(kd, (B2_, K2_, N2_), dtype=jnp.float32)

    out2 = jax.block_until_ready(batch_matmul(a2, b2))
    ref2 = jnp.einsum("bmk,bkn->bmn", a2, b2)
    assert out2.shape == (B2_, M2_, N2_)
    rel_err = jnp.max(jnp.abs(out2 - ref2)) / (jnp.max(jnp.abs(ref2)) + 1e-6)
    assert rel_err < 5e-3, f"relative error too large: {rel_err}"

    # --- Test 3: larger per-batch tiles (no batch blocking, grid over B). ----
    B3_, M3_, K3_, N3_ = 2, 256, 256, 384
    a3 = jax.random.normal(ke, (B3_, M3_, K3_), dtype=jnp.float32)
    b3 = jax.random.normal(kf, (B3_, K3_, N3_), dtype=jnp.float32)

    out3 = jax.block_until_ready(batch_matmul(a3, b3))
    ref3 = jnp.einsum("bmk,bkn->bmn", a3, b3)
    assert out3.shape == (B3_, M3_, N3_)
    rel_err3 = jnp.max(jnp.abs(out3 - ref3)) / (jnp.max(jnp.abs(ref3)) + 1e-6)
    assert rel_err3 < 5e-3, f"relative error too large: {rel_err3}"

    print("KERNEL_OK")
</pallas_src>

<mosaic_0001>
module attributes {stable_mosaic.version = 11 : i64} {
  func.func @_bmm_kernel(%arg0: i32, %arg1: i32, %arg2: i32, %arg3: i32, %arg4: memref<2x8x128xf32, #tpu.memory_space<vmem>>, %arg5: memref<2x128x128xf32, #tpu.memory_space<vmem>>, %arg6: memref<2x8x128xf32, #tpu.memory_space<vmem>>, %arg7: memref<2x8x128xf32, #tpu.memory_space<vmem>>) attributes {dimension_semantics = [#tpu.dimension_semantics<parallel>, #tpu.dimension_semantics<parallel>, #tpu.dimension_semantics<parallel>, #tpu.dimension_semantics<arbitrary>], iteration_bounds = array<i64: 1, 1, 1, 1>, scalar_prefetch = 0 : i64, scratch_operands = 1 : i64, tpu.core_type = #tpu.core_type<tc>, window_params = [{transform_indices = @transform_0, window_bounds = array<i64: 2, 8, 128>}, {transform_indices = @transform_1, window_bounds = array<i64: 2, 128, 128>}, {transform_indices = @transform_2, window_bounds = array<i64: 2, 8, 128>}]} {
    %c0 = arith.constant 0 : index
    %c0_0 = arith.constant 0 : index
    %c0_1 = arith.constant 0 : index
    %0 = vector.load %arg4[%c0, %c0_0, %c0_1] : memref<2x8x128xf32, #tpu.memory_space<vmem>>, vector<2x8x128xf32>
    %c0_2 = arith.constant 0 : index
    %c0_3 = arith.constant 0 : index
    %c0_4 = arith.constant 0 : index
    %1 = vector.load %arg5[%c0_2, %c0_3, %c0_4] : memref<2x128x128xf32, #tpu.memory_space<vmem>>, vector<2x128x128xf32>
    "tpu.trace_start"() <{level = 10 : i32, message = "bmk,bkn->bmn"}> : () -> ()
    %cst = arith.constant dense<0.000000e+00> : vector<2x8x128xf32>
    %2 = tpu.matmul %0, %1, %cst {dimension_numbers = #tpu.dot_dimension_numbers<[2], [1], [1], [2], [0, 0, 0, 1, 1, 2], [0], [0]>} : vector<2x8x128xf32>, vector<2x128x128xf32>, vector<2x8x128xf32> -> vector<2x8x128xf32>
    %c0_i32 = arith.constant 0 : i32
    "tpu.trace_stop"() : () -> ()
    %3 = arith.cmpi eq, %arg3, %c0_i32 : i32
    %4 = arith.extui %3 : i1 to i32
    %c0_i32_5 = arith.constant 0 : i32
    %5 = arith.cmpi ne, %4, %c0_i32_5 : i32
    scf.if %5 {
      %c0_10 = arith.constant 0 : index
      %c0_11 = arith.constant 0 : index
      %c0_12 = arith.constant 0 : index
      %12 = vector.load %arg7[%c0_10, %c0_11, %c0_12] : memref<2x8x128xf32, #tpu.memory_space<vmem>>, vector<2x8x128xf32>
      tpu.vector_store %arg7[%c0_10, %c0_11, %c0_12], %2 {strides = array<i32>} : memref<2x8x128xf32, #tpu.memory_space<vmem>>, vector<2x8x128xf32>,
    } else {
    }
    %c0_i32_6 = arith.constant 0 : i32
    %6 = arith.cmpi sgt, %arg3, %c0_i32_6 : i32
    %7 = arith.extui %6 : i1 to i32
    %c0_i32_7 = arith.constant 0 : i32
    %8 = arith.cmpi ne, %7, %c0_i32_7 : i32
    scf.if %8 {
      %c0_10 = arith.constant 0 : index
      %c0_11 = arith.constant 0 : index
      %c0_12 = arith.constant 0 : index
      %12 = vector.load %arg7[%c0_10, %c0_11, %c0_12] : memref<2x8x128xf32, #tpu.memory_space<vmem>>, vector<2x8x128xf32>
      %13 = arith.addf %12, %2 : vector<2x8x128xf32>
      %c0_13 = arith.constant 0 : index
      %c0_14 = arith.constant 0 : index
      %c0_15 = arith.constant 0 : index
      %14 = vector.load %arg7[%c0_13, %c0_14, %c0_15] : memref<2x8x128xf32, #tpu.memory_space<vmem>>, vector<2x8x128xf32>
      tpu.vector_store %arg7[%c0_13, %c0_14, %c0_15], %13 {strides = array<i32>} : memref<2x8x128xf32, #tpu.memory_space<vmem>>, vector<2x8x128xf32>,
    } else {
    }
    %c0_i32_8 = arith.constant 0 : i32
    %9 = arith.cmpi eq, %arg3, %c0_i32_8 : i32
    %10 = arith.extui %9 : i1 to i32
    %c0_i32_9 = arith.constant 0 : i32
    %11 = arith.cmpi ne, %10, %c0_i32_9 : i32
    scf.if %11 {
      %c0_10 = arith.constant 0 : index
      %c0_11 = arith.constant 0 : index
      %c0_12 = arith.constant 0 : index
      %12 = vector.load %arg7[%c0_10, %c0_11, %c0_12] : memref<2x8x128xf32, #tpu.memory_space<vmem>>, vector<2x8x128xf32>
      %c0_13 = arith.constant 0 : index
      %c0_14 = arith.constant 0 : index
      %c0_15 = arith.constant 0 : index
      %13 = vector.load %arg6[%c0_13, %c0_14, %c0_15] : memref<2x8x128xf32, #tpu.memory_space<vmem>>, vector<2x8x128xf32>
      tpu.vector_store %arg6[%c0_13, %c0_14, %c0_15], %12 {strides = array<i32>} : memref<2x8x128xf32, #tpu.memory_space<vmem>>, vector<2x8x128xf32>,
    } else {
    }
    return
  }
  func.func @transform_0(%arg0: i32, %arg1: i32, %arg2: i32, %arg3: i32) -> (i32, i32, i32) {
    %c0_i32 = arith.constant 0 : i32
    return %arg0, %arg1, %arg3 : i32, i32, i32
  }
  func.func @transform_1(%arg0: i32, %arg1: i32, %arg2: i32, %arg3: i32) -> (i32, i32, i32) {
    %c0_i32 = arith.constant 0 : i32
    return %arg0, %arg3, %arg2 : i32, i32, i32
  }
  func.func @transform_2(%arg0: i32, %arg1: i32, %arg2: i32, %arg3: i32) -> (i32, i32, i32) {
    %c0_i32 = arith.constant 0 : i32
    return %arg0, %arg1, %arg2 : i32, i32, i32
  }
}

</mosaic_0001>

<llo_original>
// kernel: tpu_custom_call.1
$region0: #{tpu_custom_call.1}
  #allocation0 [shape = 'u32[]', space=smem, size = 0x4, offset = 0x4, fixed_abs, tag = 'smem constant byte address 0x4 - core index']
  #allocation1 [shape = 'u32[144,128]{1,0:T(1,128)}', space=vmem, size = 0x12000, scoped, tag = 'internal scratch']
  #allocation2 [shape = 'f32[2,8,128]{2,1,0:T(8,128)}', space=vmem, size = 0x2000, scoped, tag = 'scratch operand']
  %s0 = inlined_call_operand.hbm [shape: f32[2,8,128], index: 0, kind: input, shape index: {}]
  %s1 = inlined_call_operand.hbm [shape: f32[2,128,128], index: 1, kind: input, shape index: {}]
  %s2 = inlined_call_operand.hbm [shape: f32[2,8,128], index: 2, kind: output, shape index: {}]
  %s3 = sld [smem:[#allocation0]]
  $region38: #{tpu_custom_call.1} parent=0
    _
  %s5 = ssub.s32 1, %s3
  %s6 = scalar_select 0, %s5, %s3
  $region1: #{tpu_custom_call.1} parent=0
    #allocation3 [shape = 'u8[8192]{0}', space=vmem, size = 0x2000, scoped, tag = 'input window, operand 0, single buffered']
    #allocation4 [shape = 's32[1]{0}', space=sflag, size = 0x4, scoped, tag = 'scoped memory for tpu_custom_call.1']
    #allocation5 [shape = 's32[1]{0}', space=sflag, size = 0x4, scoped, tag = 'scoped memory for tpu_custom_call.1']
    #allocation6 [shape = 'u8[131072]{0}', space=vmem, size = 0x20000, scoped, tag = 'input window, operand 1, single buffered']
    #allocation7 [shape = 's32[1]{0}', space=sflag, size = 0x4, scoped, tag = 'scoped memory for tpu_custom_call.1']
    #allocation8 [shape = 'u8[8192]{0}', space=vmem, size = 0x2000, scoped, tag = 'output window, operand 0, single buffered']
    %7 = vsyncpa [#allocation4], 0
    %8 = vsyncpa [#allocation7], 0
    %9 = vsyncpa [#allocation5], 0
    // Predicated region
    $region2: #{tpu_custom_call.1} parent=1 // pred_check
      _
    $region3: #{tpu_custom_call.1} parent=1 // pred_check_branch
      %11 = sbr.rel (0) target = $region5
    $region4: #{tpu_custom_call.1} parent=1 // pred_region
      %s13 = ssub.s32 256, 256
      %14 = vsyncadd [#allocation4], %s13
      %s15 = sshll.u32 [#allocation3], 4
      %s16 = int_to_ptr.vmem [resolvable:$true] %s15
      %21 = dma.hbm_to_vmem [thread:$0]  %s0, 256, %s16, [#allocation4], 128, 128, 8
    $region5: #{tpu_custom_call.1} parent=1 // pred_fallthru
      _
    // Predicated region
    $region6: #{tpu_custom_call.1} parent=1 // pred_check
      _
    $region7: #{tpu_custom_call.1} parent=1 // pred_check_branch
      %23 = sbr.rel (0) target = $region9
    $region8: #{tpu_custom_call.1} parent=1 // pred_region
      %s25 = ssub.s32 4096, 4096
      %26 = vsyncadd [#allocation7], %s25
      %s27 = sshll.u32 [#allocation6], 4
      %s28 = int_to_ptr.vmem [resolvable:$true] %s27
      %33 = dma.hbm_to_vmem [thread:$0]  %s1, 4096, %s28, [#allocation7], 128, 128, 8
    $region9: #{tpu_custom_call.1} parent=1 // pred_fallthru
      _
    // Predicated region
    $region10: #{tpu_custom_call.1} parent=1 // pred_check
      _
    $region11: #{tpu_custom_call.1} parent=1 // pred_check_branch
      %35 = sbr.rel (0) target = $region13
    $region12: #{tpu_custom_call.1} parent=1 // pred_region
      %36 = dma.done [#allocation4], 256
    $region13: #{tpu_custom_call.1} parent=1 // pred_fallthru
      _
    // Predicated region
    $region14: #{tpu_custom_call.1} parent=1 // pred_check
      _
    $region15: #{tpu_custom_call.1} parent=1 // pred_check_branch
      %38 = sbr.rel (0) target = $region17
    $region16: #{tpu_custom_call.1} parent=1 // pred_region
      %39 = dma.done [#allocation7], 4096
    $region17: #{tpu_custom_call.1} parent=1 // pred_fallthru
      _
    %v40 = vld [vmem:[#allocation3] sm:$0xff]
    %v41 = vld [vmem:[#allocation3 + $0x8] sm:$0xff]
    %v42 = vld [vmem:[#allocation6] sm:$0xff]
    %v43 = vld [vmem:[#allocation6 + $0x8] sm:$0xff]
    %v44 = vld [vmem:[#allocation6 + $0x10] sm:$0xff]
    %v45 = vld [vmem:[#allocation6 + $0x18] sm:$0xff]
    %v46 = vld [vmem:[#allocation6 + $0x20] sm:$0xff]
    %v47 = vld [vmem:[#allocation6 + $0x28] sm:$0xff]
    %v48 = vld [vmem:[#allocation6 + $0x30] sm:$0xff]
    %v49 = vld [vmem:[#allocation6 + $0x38] sm:$0xff]
    %v50 = vld [vmem:[#allocation6 + $0x40] sm:$0xff]
    %v51 = vld [vmem:[#allocation6 + $0x48] sm:$0xff]
    %v52 = vld [vmem:[#allocation6 + $0x50] sm:$0xff]
    %v53 = vld [vmem:[#allocation6 + $0x58] sm:$0xff]
    %v54 = vld [vmem:[#allocation6 + $0x60] sm:$0xff]
    %v55 = vld [vmem:[#allocation6 + $0x68] sm:$0xff]
    %v56 = vld [vmem:[#allocation6 + $0x70] sm:$0xff]
    %v57 = vld [vmem:[#allocation6 + $0x78] sm:$0xff]
    %v58 = vld [vmem:[#allocation6 + $0x80] sm:$0xff]
    %v59 = vld [vmem:[#allocation6 + $0x88] sm:$0xff]
    %v60 = vld [vmem:[#allocation6 + $0x90] sm:$0xff]
    %v61 = vld [vmem:[#allocation6 + $0x98] sm:$0xff]
    %v62 = vld [vmem:[#allocation6 + $0xa0] sm:$0xff]
    %v63 = vld [vmem:[#allocation6 + $0xa8] sm:$0xff]
    %v64 = vld [vmem:[#allocation6 + $0xb0] sm:$0xff]
    %v65 = vld [vmem:[#allocation6 + $0xb8] sm:$0xff]
    %v66 = vld [vmem:[#allocation6 + $0xc0] sm:$0xff]
    %v67 = vld [vmem:[#allocation6 + $0xc8] sm:$0xff]
    %v68 = vld [vmem:[#allocation6 + $0xd0] sm:$0xff]
    %v69 = vld [vmem:[#allocation6 + $0xd8] sm:$0xff]
    %v70 = vld [vmem:[#allocation6 + $0xe0] sm:$0xff]
    %v71 = vld [vmem:[#allocation6 + $0xe8] sm:$0xff]
    %v72 = vld [vmem:[#allocation6 + $0xf0] sm:$0xff]
    %v73 = vld [vmem:[#allocation6 + $0xf8] sm:$0xff]
    %74 = vmatprep.subr.mxu0 0.0
    %75 = vmatpush1.msra.mxu0 %v42
    %76 = vmatprep.subr.mxu0 0.0
    %77 = vmatpush1.msra.mxu0 %v43
    %78 = vmatprep.subr.mxu0 0.0
    %79 = vmatpush1.msra.mxu0 %v44
    %80 = vmatprep.subr.mxu0 0.0
    %81 = vmatpush1.msra.mxu0 %v45
    %82 = vmatprep.subr.mxu0 0.0
    %83 = vmatpush1.msra.mxu0 %v46
    %84 = vmatprep.subr.mxu0 0.0
    %85 = vmatpush1.msra.mxu0 %v47
    %86 = vmatprep.subr.mxu0 0.0
    %87 = vmatpush1.msra.mxu0 %v48
    %88 = vmatprep.subr.mxu0 0.0
    %89 = vmatpush1.msra.mxu0 %v49
    %90 = vmatprep.subr.mxu0 0.0
    %91 = vmatpush1.msra.mxu0 %v50
    %92 = vmatprep.subr.mxu0 0.0
    %93 = vmatpush1.msra.mxu0 %v51
    %94 = vmatprep.subr.mxu0 0.0
    %95 = vmatpush1.msra.mxu0 %v52
    %96 = vmatprep.subr.mxu0 0.0
    %97 = vmatpush1.msra.mxu0 %v53
    %98 = vmatprep.subr.mxu0 0.0
    %99 = vmatpush1.msra.mxu0 %v54
    %100 = vmatprep.subr.mxu0 0.0
    %101 = vmatpush1.msra.mxu0 %v55
    %102 = vmatprep.subr.mxu0 0.0
    %103 = vmatpush1.msra.mxu0 %v56
    %104 = vmatprep.subr.mxu0 0.0
    %105 = vmatpush1.msra.mxu0 %v57
    %106 = vmatprep.subr.mxu0 0.0
    %107 = vmatpush1.msra.mxu0 0.0
    %108 = vmatprep.subr.mxu0 0.0
    %109 = vmatpush1.msra.mxu0 0.0
    %110 = vmatprep.subr.mxu0 0.0
    %111 = vmatpush1.msra.mxu0 0.0
    %112 = vmatprep.subr.mxu0 0.0
    %113 = vmatpush1.msra.mxu0 0.0
    %114 = vmatprep.subr.mxu0 0.0
    %115 = vmatpush1.msra.mxu0 0.0
    %116 = vmatprep.subr.mxu0 0.0
    %117 = vmatpush1.msra.mxu0 0.0
    %118 = vmatprep.subr.mxu0 0.0
    %119 = vmatpush1.msra.mxu0 0.0
    %120 = vmatprep.subr.mxu0 0.0
    %121 = vmatpush1.msra.mxu0 0.0
    %122 = vmatprep.subr.mxu0 0.0
    %123 = vmatpush1.msra.mxu0 0.0
    %124 = vmatprep.subr.mxu0 0.0
    %125 = vmatpush1.msra.mxu0 0.0
    %126 = vmatprep.subr.mxu0 0.0
    %127 = vmatpush1.msra.mxu0 0.0
    %128 = vmatprep.subr.mxu0 0.0
    %129 = vmatpush1.msra.mxu0 0.0
    %130 = vmatprep.subr.mxu0 0.0
    %131 = vmatpush1.msra.mxu0 0.0
    %132 = vmatprep.subr.mxu0 0.0
    %133 = vmatpush1.msra.mxu0 0.0
    %134 = vmatprep.subr.mxu0 0.0
    %135 = vmatpush1.msra.mxu0 0.0
    %136 = vmatprep.subr.mxu0 0.0
    %137 = vmatpush1.msra.mxu0 0.0
    %138 = vmatprep.mubr.f32.mxu0 0.0
    %139 = vmatmul.mubr.f32.gmra.mrb[0].mxu0 %v40
    %v140 = vpop.f32.mrb[0].mxu0
    %v141 = vadd.f32 0.0, %v140
    %v142 = vpop.f32.mrb[0].mxu0
    %143 = vdwg.mxu0
    %144 = vmatprep.subr.mxu0 0.0
    %145 = vmatpush1.msra.mxu0 %v58
    %146 = vmatprep.subr.mxu0 0.0
    %147 = vmatpush1.msra.mxu0 %v59
    %148 = vmatprep.subr.mxu0 0.0
    %149 = vmatpush1.msra.mxu0 %v60
    %150 = vmatprep.subr.mxu0 0.0
    %151 = vmatpush1.msra.mxu0 %v61
    %152 = vmatprep.subr.mxu0 0.0
    %153 = vmatpush1.msra.mxu0 %v62
    %154 = vmatprep.subr.mxu0 0.0
    %155 = vmatpush1.msra.mxu0 %v63
    %156 = vmatprep.subr.mxu0 0.0
    %157 = vmatpush1.msra.mxu0 %v64
    %158 = vmatprep.subr.mxu0 0.0
    %159 = vmatpush1.msra.mxu0 %v65
    %160 = vmatprep.subr.mxu0 0.0
    %161 = vmatpush1.msra.mxu0 %v66
    %162 = vmatprep.subr.mxu0 0.0
    %163 = vmatpush1.msra.mxu0 %v67
    %164 = vmatprep.subr.mxu0 0.0
    %165 = vmatpush1.msra.mxu0 %v68
    %166 = vmatprep.subr.mxu0 0.0
    %167 = vmatpush1.msra.mxu0 %v69
    %168 = vmatprep.subr.mxu0 0.0
    %169 = vmatpush1.msra.mxu0 %v70
    %170 = vmatprep.subr.mxu0 0.0
    %171 = vmatpush1.msra.mxu0 %v71
    %172 = vmatprep.subr.mxu0 0.0
    %173 = vmatpush1.msra.mxu0 %v72
    %174 = vmatprep.subr.mxu0 0.0
    %175 = vmatpush1.msra.mxu0 %v73
    %176 = vmatprep.subr.mxu0 0.0
    %177 = vmatpush1.msra.mxu0 0.0
    %178 = vmatprep.subr.mxu0 0.0
    %179 = vmatpush1.msra.mxu0 0.0
    %180 = vmatprep.subr.mxu0 0.0
    %181 = vmatpush1.msra.mxu0 0.0
    %182 = vmatprep.subr.mxu0 0.0
    %183 = vmatpush1.msra.mxu0 0.0
    %184 = vmatprep.subr.mxu0 0.0
    %185 = vmatpush1.msra.mxu0 0.0
    %186 = vmatprep.subr.mxu0 0.0
    %187 = vmatpush1.msra.mxu0 0.0
    %188 = vmatprep.subr.mxu0 0.0
    %189 = vmatpush1.msra.mxu0 0.0
    %190 = vmatprep.subr.mxu0 0.0
    %191 = vmatpush1.msra.mxu0 0.0
    %192 = vmatprep.subr.mxu0 0.0
    %193 = vmatpush1.msra.mxu0 0.0
    %194 = vmatprep.subr.mxu0 0.0
    %195 = vmatpush1.msra.mxu0 0.0
    %196 = vmatprep.subr.mxu0 0.0
    %197 = vmatpush1.msra.mxu0 0.0
    %198 = vmatprep.subr.mxu0 0.0
    %199 = vmatpush1.msra.mxu0 0.0
    %200 = vmatprep.subr.mxu0 0.0
    %201 = vmatpush1.msra.mxu0 0.0
    %202 = vmatprep.subr.mxu0 0.0
    %203 = vmatpush1.msra.mxu0 0.0
    %204 = vmatprep.subr.mxu0 0.0
    %205 = vmatpush1.msra.mxu0 0.0
    %206 = vmatprep.subr.mxu0 0.0
    %207 = vmatpush1.msra.mxu0 0.0
    %208 = vmatprep.mubr.f32.mxu0 0.0
    %209 = vmatmul.mubr.f32.gmra.mrb[0].mxu0 %v41
    %v210 = vpop.f32.mrb[0].mxu0
    %v211 = vadd.f32 0.0, %v210
    %v212 = vpop.f32.mrb[0].mxu0
    %213 = vdwg.mxu0
    %p214 = scmp.eq.s32.totalorder 0, 0
    // Predicated region
    $region18: #{tpu_custom_call.1} parent=1 // pred_check
      %p215 = pneg %p214
    $region19: #{tpu_custom_call.1} parent=1 // pred_check_branch
      %217 = sbr.rel (%p215) target = $region21
    $region20: #{tpu_custom_call.1} parent=1 // pred_region
      %218 = vst [vmem:[#allocation2] sm:$0xff] %v141
      %219 = vst [vmem:[#allocation2 + $0x8] sm:$0xff] %v211
    $region21: #{tpu_custom_call.1} parent=1 // pred_fallthru
      _
    %p220 = scmp.gt.s32.totalorder 0, 0
    // Predicated region
    $region22: #{tpu_custom_call.1} parent=1 // pred_check
      %p221 = pneg %p220
    $region23: #{tpu_custom_call.1} parent=1 // pred_check_branch
      %223 = sbr.rel (%p221) target = $region25
    $region24: #{tpu_custom_call.1} parent=1 // pred_region
      %v224 = vld [vmem:[#allocation2] sm:$0xff]
      %v225 = vld [vmem:[#allocation2 + $0x8] sm:$0xff]
      %v226 = vadd.f32 %v224, %v141
      %v227 = vadd.f32 %v225, %v211
      %228 = vst [vmem:[#allocation2] sm:$0xff] %v226
      %229 = vst [vmem:[#allocation2 + $0x8] sm:$0xff] %v227
    $region25: #{tpu_custom_call.1} parent=1 // pred_fallthru
      _
    // Predicated region
    $region26: #{tpu_custom_call.1} parent=1 // pred_check
      %p230 = pneg %p214
    $region27: #{tpu_custom_call.1} parent=1 // pred_check_branch
      %232 = sbr.rel (%p230) target = $region29
    $region28: #{tpu_custom_call.1} parent=1 // pred_region
      %v233 = vld [vmem:[#allocation2] sm:$0xff]
      %v234 = vld [vmem:[#allocation2 + $0x8] sm:$0xff]
      %235 = vst [vmem:[#allocation8] sm:$0xff] %v233
      %236 = vst [vmem:[#allocation8 + $0x8] sm:$0xff] %v234
    $region29: #{tpu_custom_call.1} parent=1 // pred_fallthru
      _
    // Predicated region
    $region30: #{tpu_custom_call.1} parent=1 // pred_check
      _
    $region31: #{tpu_custom_call.1} parent=1 // pred_check_branch
      %238 = sbr.rel (0) target = $region33
    $region32: #{tpu_custom_call.1} parent=1 // pred_region
      %s240 = ssub.s32 256, 256
      %241 = vsyncadd [#allocation5], %s240
      %s242 = sshll.u32 [#allocation8], 4
      %s243 = int_to_ptr.vmem [resolvable:$true] %s242
      %248 = dma.vmem_to_hbm [thread:$0]  %s243, 256, %s2, [#allocation5], 128, 128, 8
    $region33: #{tpu_custom_call.1} parent=1 // pred_fallthru
      _
    // Predicated region
    $region34: #{tpu_custom_call.1} parent=1 // pred_check
      _
    $region35: #{tpu_custom_call.1} parent=1 // pred_check_branch
      %250 = sbr.rel (0) target = $region37
    $region36: #{tpu_custom_call.1} parent=1 // pred_region
      %251 = dma.done [#allocation5], 256
    $region37: #{tpu_custom_call.1} parent=1 // pred_fallthru
      _
    %252 = vsyncpa [#allocation4], 1
    %253 = vsyncpa [#allocation7], 1
    %254 = vsyncpa [#allocation5], 1

</llo_original>
